<compile_context>
chip_gen: v6e
topology: v6e:2x2x1
jax: 0.10.0
libtpu: 0.0.40
codegen_flags: <defaults>
</compile_context>

<pallas_src>
import math

import jax
import jax.numpy as jnp
from jax import lax
from jax.experimental import pallas as pl
from jax.experimental.pallas import tpu as pltpu

# ---- config (mirrors the model_config fields used by cust_embeddings) ----
D_MODEL = 32             # d_model
VOCAB = 64               # NUM_ACTIONS
SEQ_LEN = 6              # SEQUENCE_LENGTH
SEQ = SEQ_LEN + 2        # sequence_length used inside the module
EMB_INIT_SCALE = 0.02    # emb_init_scale
MAX_TIMESCALE = 10000.0  # max_timescale
# use_sinosoidal=True -> fixed sinusoidal positional encodings (a buffer).

_SQRT_D = float(math.sqrt(D_MODEL))


def _embed_kernel(ids_ref, table_ref, pos_ref, o_ref):
    """Fused: scaled one-hot gather (MXU) + positional add, flat (B*S, D)."""
    ids = ids_ref[...]                                     # (B*S, 1) int32
    n = ids.shape[0]
    s = pos_ref.shape[0]
    b = n // s                                             # static at trace time
    # TODO(synk): out-of-range token ids silently map to a zero embedding here,
    # whereas torch.nn.Embedding would raise an index error.
    iota = lax.broadcasted_iota(jnp.int32, (n, VOCAB), 1)
    # sqrt(d_model) folded into the one-hot: MXU absorbs the scale for free.
    onehot = jnp.where(iota == ids, jnp.float32(_SQRT_D), jnp.float32(0.0))
    emb = jnp.dot(onehot, table_ref[...],
                  preferred_element_type=jnp.float32)      # (B*S, D), scaled
    # Broadcast (S, D) positional table over the batch as a cheap sublane-axis
    # repeat; row b*S + s matches ids.reshape(B*S) row-major order.
    o_ref[...] = emb + jnp.tile(pos_ref[...], (b, 1))


def cust_embeddings_fwd(ids, table, pos):
    B, S = ids.shape
    V, D = table.shape
    assert pos.shape == (S, D)
    assert V == VOCAB and D == D_MODEL
    ids2d = ids.reshape(B * S, 1).astype(jnp.int32)
    vmem = pl.BlockSpec(memory_space=pltpu.MemorySpace.VMEM)
    out2d = pl.pallas_call(
        _embed_kernel,
        out_shape=jax.ShapeDtypeStruct((B * S, D), jnp.float32),
        in_specs=[vmem, vmem, vmem],
        out_specs=vmem,
    )(ids2d, table, pos)
    # (B, S, D) view is a free metadata reshape outside the kernel.
    return out2d.reshape(B, S, D)


def _sinusoidal_pos(seq, dim, max_ts):
    """Matches _get_sinusoidal_position_encoding in the PyTorch module."""
    assert dim % 2 == 0, "sinusoidal encoding assumes even d_model (as in torch ref)"
    pos = jnp.arange(seq, dtype=jnp.float32)[:, None]
    div = jnp.exp(jnp.arange(0, dim, 2, dtype=jnp.float32) *
                  (-math.log(max_ts) / dim))
    inp = pos * div[None, :]
    pe = jnp.zeros((seq, dim), jnp.float32)
    pe = pe.at[:, 0::2].set(jnp.sin(inp))
    pe = pe.at[:, 1::2].set(jnp.cos(inp))
    return pe


if __name__ == "__main__":
    key = jax.random.PRNGKey(0)
    k_emb, k_ids = jax.random.split(key)

    B = 2
    # trunc_normal_(std=emb_init_scale) token embedding table
    table = (EMB_INIT_SCALE *
             jax.random.truncated_normal(k_emb, -2.0, 2.0,
                                         (VOCAB, D_MODEL))).astype(jnp.float32)
    pos = _sinusoidal_pos(SEQ, D_MODEL, MAX_TIMESCALE)
    ids = jax.random.randint(k_ids, (B, SEQ), 0, VOCAB, dtype=jnp.int32)

    out = jax.block_until_ready(cust_embeddings_fwd(ids, table, pos))

    # pure-JAX reference of the module's forward
    ref = jnp.take(table, ids, axis=0) * math.sqrt(D_MODEL) + pos[None, :, :]
    assert out.shape == (B, SEQ, D_MODEL)
    assert bool(jnp.allclose(out, ref, atol=1e-5, rtol=1e-5))
    print("KERNEL_OK")
</pallas_src>

<mosaic_0001>
module attributes {stable_mosaic.version = 11 : i64} {
  func.func @_embed_kernel(%arg0: memref<16x1xi32, #tpu.memory_space<vmem>>, %arg1: memref<64x32xf32, #tpu.memory_space<vmem>>, %arg2: memref<8x32xf32, #tpu.memory_space<vmem>>, %arg3: memref<16x32xf32, #tpu.memory_space<vmem>>) attributes {dimension_semantics = [], scalar_prefetch = 0 : i64, scratch_operands = 0 : i64, tpu.core_type = #tpu.core_type<tc>} {
    %c0 = arith.constant 0 : index
    %c0_0 = arith.constant 0 : index
    %0 = vector.load %arg0[%c0, %c0_0] : memref<16x1xi32, #tpu.memory_space<vmem>>, vector<16x1xi32>
    %1 = tpu.iota {dimensions = array<i32: 1>} : vector<16x64xi32>
    %2 = vector.broadcast %0 : vector<16x1xi32> to vector<16x64xi32>
    %3 = arith.cmpi eq, %1, %2 : vector<16x64xi32>
    %cst = arith.constant 5.65685415 : f32
    %cst_1 = arith.constant 0.000000e+00 : f32
    %4 = vector.broadcast %cst : f32 to vector<16x64xf32>
    %5 = vector.broadcast %cst_1 : f32 to vector<16x64xf32>
    %6 = arith.select %3, %4, %5 : vector<16x64xi1>, vector<16x64xf32>
    %c0_2 = arith.constant 0 : index
    %c0_3 = arith.constant 0 : index
    %7 = vector.load %arg1[%c0_2, %c0_3] : memref<64x32xf32, #tpu.memory_space<vmem>>, vector<64x32xf32>
    %cst_4 = arith.constant dense<0.000000e+00> : vector<16x32xf32>
    %8 = tpu.matmul %6, %7, %cst_4 {dimension_numbers = #tpu.dot_dimension_numbers<[1], [0], [0], [1], [0, 0, 1, 1], [], []>} : vector<16x64xf32>, vector<64x32xf32>, vector<16x32xf32> -> vector<16x32xf32>
    %c0_5 = arith.constant 0 : index
    %c0_6 = arith.constant 0 : index
    %9 = vector.load %arg2[%c0_5, %c0_6] : memref<8x32xf32, #tpu.memory_space<vmem>>, vector<8x32xf32>
    %10 = tpu.concatenate %9, %9 in 0 : vector<8x32xf32>, vector<8x32xf32> -> vector<16x32xf32>
    %11 = arith.addf %8, %10 : vector<16x32xf32>
    %c0_7 = arith.constant 0 : index
    %c0_8 = arith.constant 0 : index
    %12 = vector.load %arg3[%c0_7, %c0_8] : memref<16x32xf32, #tpu.memory_space<vmem>>, vector<16x32xf32>
    tpu.vector_store %arg3[%c0_7, %c0_8], %11 {strides = array<i32>} : memref<16x32xf32, #tpu.memory_space<vmem>>, vector<16x32xf32>,
    return
  }
}

</mosaic_0001>

<llo_original>
// kernel: tpu_custom_call.1
$region0: #{tpu_custom_call.1}
  #allocation0 [shape = 'u32[]', space=smem, size = 0x4, offset = 0x4, fixed_abs, tag = 'smem constant byte address 0x4 - core index']
  #allocation1 [shape = 'u32[144,128]{1,0:T(1,128)}', space=vmem, size = 0x12000, scoped, tag = 'internal scratch']
  %s0 = inlined_call_operand.vmem [shape: s32[16,1], index: 0, kind: input, shape index: {}]
  %s1 = inlined_call_operand.vmem [shape: f32[64,32], index: 1, kind: input, shape index: {}]
  %s2 = inlined_call_operand.vmem [shape: f32[8,32], index: 2, kind: input, shape index: {}]
  %s3 = inlined_call_operand.hbm [shape: f32[16,32], index: 3, kind: output, shape index: {}]
  %s4 = sld [smem:[#allocation0]]
  $region22: #{tpu_custom_call.1} parent=0
    _
  %s6 = ssub.s32 1, %s4
  %s7 = scalar_select 0, %s6, %s4
  $region1: #{tpu_custom_call.1} parent=0
    #allocation2 [shape = 'u8[8192]{0}', space=vmem, size = 0x2000, scoped, tag = 'output window, operand 0, single buffered']
    #allocation3 [shape = 's32[1]{0}', space=sflag, size = 0x4, scoped, tag = 'scoped memory for tpu_custom_call.1']
    %8 = vsyncpa [#allocation3], 0
    // Predicated region
    $region2: #{tpu_custom_call.1} parent=1 // pred_check
      _
    $region3: #{tpu_custom_call.1} parent=1 // pred_check_branch
      %10 = sbr.rel (0) target = $region5
    $region4: #{tpu_custom_call.1} parent=1 // pred_region
      _
    $region5: #{tpu_custom_call.1} parent=1 // pred_fallthru
      _
    // Predicated region
    $region6: #{tpu_custom_call.1} parent=1 // pred_check
      _
    $region7: #{tpu_custom_call.1} parent=1 // pred_check_branch
      %12 = sbr.rel (0) target = $region9
    $region8: #{tpu_custom_call.1} parent=1 // pred_region
      _
    $region9: #{tpu_custom_call.1} parent=1 // pred_fallthru
      _
    // Predicated region
    $region10: #{tpu_custom_call.1} parent=1 // pred_check
      _
    $region11: #{tpu_custom_call.1} parent=1 // pred_check_branch
      %14 = sbr.rel (0) target = $region13
    $region12: #{tpu_custom_call.1} parent=1 // pred_region
      _
    $region13: #{tpu_custom_call.1} parent=1 // pred_fallthru
      _
    %v15 = vld [vmem:[%s0] sm:$0xff]
    %v16 = vld [vmem:[%s0 + $0x8] sm:$0xff]
    %v17 = vlaneseq
    %v18 = vand.u32 %v17, 127
    %19 = vset.pattern.permute.xlu0 0
    %20 = vperm.xlu0 %19, %v15
    %v21 = vpop.permute.xlu0 %20
    %22 = vset.pattern.permute.xlu0 0
    %23 = vperm.xlu0 %22, %v16
    %v24 = vpop.permute.xlu0 %23
    %vm25 = vcmp.eq.s32.totalorder %v18, %v21
    %vm26 = vcmp.eq.s32.totalorder %v18, %v24
    %v27 = vsel %vm25, 5.656854, 0.0
    %v28 = vsel %vm26, 5.656854, 0.0
    %v29 = vld [vmem:[%s1] sm:$0xff]
    %v30 = vld [vmem:[%s1 + $0x8] sm:$0xff]
    %v31 = vld [vmem:[%s1 + $0x10] sm:$0xff]
    %v32 = vld [vmem:[%s1 + $0x18] sm:$0xff]
    %v33 = vld [vmem:[%s1 + $0x20] sm:$0xff]
    %v34 = vld [vmem:[%s1 + $0x28] sm:$0xff]
    %v35 = vld [vmem:[%s1 + $0x30] sm:$0xff]
    %v36 = vld [vmem:[%s1 + $0x38] sm:$0xff]
    %v37 = vld [vmem:[%s2] sm:$0xff]
    %vm38 = vcmask 523264
    %v40 = vsel %vm38, %v27, 0
    %v43 = vsel %vm38, %v28, 0
    %45 = vmatprep.subr.mxu0 0.0
    %46 = vmatpush1.msra.mxu0 0.0
    %47 = vmatprep.subr.mxu0 0.0
    %48 = vmatpush1.msra.mxu0 0.0
    %49 = vmatprep.subr.mxu0 0.0
    %50 = vmatpush1.msra.mxu0 0.0
    %51 = vmatprep.subr.mxu0 0.0
    %52 = vmatpush1.msra.mxu0 0.0
    %53 = vmatprep.subr.mxu0 0.0
    %54 = vmatpush1.msra.mxu0 0.0
    %55 = vmatprep.subr.mxu0 0.0
    %56 = vmatpush1.msra.mxu0 0.0
    %57 = vmatprep.subr.mxu0 0.0
    %58 = vmatpush1.msra.mxu0 0.0
    %59 = vmatprep.subr.mxu0 0.0
    %60 = vmatpush1.msra.mxu0 0.0
    %61 = vmatprep.subr.mxu0 0.0
    %62 = vmatpush1.msra.mxu0 %v36
    %63 = vmatprep.subr.mxu0 0.0
    %64 = vmatpush1.msra.mxu0 %v35
    %65 = vmatprep.subr.mxu0 0.0
    %66 = vmatpush1.msra.mxu0 %v34
    %67 = vmatprep.subr.mxu0 0.0
    %68 = vmatpush1.msra.mxu0 %v33
    %69 = vmatprep.subr.mxu0 0.0
    %70 = vmatpush1.msra.mxu0 %v32
    %71 = vmatprep.subr.mxu0 0.0
    %72 = vmatpush1.msra.mxu0 %v31
    %73 = vmatprep.subr.mxu0 0.0
    %74 = vmatpush1.msra.mxu0 %v30
    %75 = vmatprep.subr.mxu0 0.0
    %76 = vmatpush1.msra.mxu0 %v29
    %77 = vmatprep.subr.mxu0 0.0
    %78 = vmatpush2.msra.mxu0 0.0
    %79 = vmatprep.subr.mxu0 0.0
    %80 = vmatpush2.msra.mxu0 0.0
    %81 = vmatprep.subr.mxu0 0.0
    %82 = vmatpush2.msra.mxu0 0.0
    %83 = vmatprep.subr.mxu0 0.0
    %84 = vmatpush2.msra.mxu0 0.0
    %85 = vmatprep.subr.mxu0 0.0
    %86 = vmatpush2.msra.mxu0 0.0
    %87 = vmatprep.subr.mxu0 0.0
    %88 = vmatpush2.msra.mxu0 0.0
    %89 = vmatprep.subr.mxu0 0.0
    %90 = vmatpush2.msra.mxu0 0.0
    %91 = vmatprep.subr.mxu0 0.0
    %92 = vmatpush2.msra.mxu0 0.0
    %93 = vmatprep.subr.mxu0 0.0
    %94 = vmatpush2.msra.mxu0 0.0
    %95 = vmatprep.subr.mxu0 0.0
    %96 = vmatpush2.msra.mxu0 0.0
    %97 = vmatprep.subr.mxu0 0.0
    %98 = vmatpush2.msra.mxu0 0.0
    %99 = vmatprep.subr.mxu0 0.0
    %100 = vmatpush2.msra.mxu0 0.0
    %101 = vmatprep.subr.mxu0 0.0
    %102 = vmatpush2.msra.mxu0 0.0
    %103 = vmatprep.subr.mxu0 0.0
    %104 = vmatpush2.msra.mxu0 0.0
    %105 = vmatprep.subr.mxu0 0.0
    %106 = vmatpush2.msra.mxu0 0.0
    %107 = vmatprep.subr.mxu0 0.0
    %108 = vmatpush2.msra.mxu0 0.0
    %109 = vmatprep.mubr.f32.mxu0 0.0
    %110 = vmatmul.mubr.f32.gmra.mxu0 %v40
    %v111 = vpop.f32.mrf.mxu0
    %v112 = vadd.f32 %v37, %v111
    %v113 = vpop.f32.mrf.mxu0
    %114 = vmatprep.mubr.f32.mxu0 0.0
    %115 = vmatmul.mubr.f32.gmra.mxu0 %v43
    %v116 = vpop.f32.mrf.mxu0
    %v117 = vadd.f32 %v37, %v116
    %v118 = vpop.f32.mrf.mxu0
    %119 = vdwg.mxu0
    %vm120 = vcmask 261120
    %121 = vst.msk [vmem:[#allocation2] sm:$0xff] %vm120, %v112
    %122 = vst.msk [vmem:[#allocation2 + $0x8] sm:$0xff] %vm120, %v117
    // Predicated region
    $region14: #{tpu_custom_call.1} parent=1 // pred_check
      _
    $region15: #{tpu_custom_call.1} parent=1 // pred_check_branch
      %124 = sbr.rel (0) target = $region17
    $region16: #{tpu_custom_call.1} parent=1 // pred_region
      %s126 = ssub.s32 256, 256
      %127 = vsyncadd [#allocation3], %s126
      %s128 = sshll.u32 [#allocation2], 4
      %s129 = int_to_ptr.vmem [resolvable:$true] %s128
      %134 = dma.vmem_to_hbm [thread:$0]  %s129, 256, %s3, [#allocation3], 128, 128, 8
    $region17: #{tpu_custom_call.1} parent=1 // pred_fallthru
      _
    // Predicated region
    $region18: #{tpu_custom_call.1} parent=1 // pred_check
      _
    $region19: #{tpu_custom_call.1} parent=1 // pred_check_branch
      %136 = sbr.rel (0) target = $region21
    $region20: #{tpu_custom_call.1} parent=1 // pred_region
      %137 = dma.done [#allocation3], 256
    $region21: #{tpu_custom_call.1} parent=1 // pred_fallthru
      _
    %138 = vsyncpa [#allocation3], 1

</llo_original>
